<compile_context>
chip_gen: v5e
topology: v5e:2x2
jax: 0.10.0
libtpu: 0.0.40
codegen_flags: <defaults>
</compile_context>

<pallas_src>
import functools

import jax
import jax.numpy as jnp
from jax.experimental import pallas as pl
from jax.experimental.pallas import tpu as pltpu


def _ce_kernel(x_ref, y_ref, out_ref, *, eta, n_total):
    """One grid step: (TB, C) logits + (TB, 1) labels -> one partial loss sum.

    out_ref is a (1, 8, 128) lane-dense slab; the tile's partial sum is stored
    at [0, 0, 0] and zeros elsewhere, so the wrapper just sums the whole slab.
    """
    i = pl.program_id(0)

    x = x_ref[...].astype(jnp.float32)      # (TB, C)
    y = y_ref[...]                          # (TB, 1) int32
    tb, c = x.shape

    # Numerically stable log-softmax pieces without materializing logp:
    #   per_sample = lse - z[label]                                (eta == 0)
    #   per_sample = lse - neg*sum(z) - (pos-neg)*z[label]         (smoothed)
    m = jnp.max(x, axis=1, keepdims=True)                          # (TB, 1)
    z = x - m
    lse = jnp.log(jnp.sum(jnp.exp(z), axis=1, keepdims=True))      # (TB, 1)

    col = jax.lax.broadcasted_iota(jnp.int32, (1, c), 1)           # (1, C)
    z_label = jnp.sum(jnp.where(col == y, z, 0.0),
                      axis=1, keepdims=True)                       # (TB, 1)

    if eta == 0.0:
        per_sample = lse - z_label
    else:
        pos = 1.0 - eta + eta / c
        neg = eta / c
        sum_z = jnp.sum(z, axis=1, keepdims=True)
        per_sample = lse - neg * sum_z - (pos - neg) * z_label

    # Mask rows of the ragged last block (x is NOT padded on the host; rows
    # beyond n_total hold unspecified values -> zero them here; jnp.where
    # stops any inf/NaN from garbage logits leaking into the sum).
    row = i * tb + jax.lax.broadcasted_iota(jnp.int32, (tb, 1), 0)
    per_sample = jnp.where(row < n_total, per_sample, 0.0)

    tile_sum = jnp.sum(per_sample)
    sub = jax.lax.broadcasted_iota(jnp.int32, out_ref.shape, 1)
    lane = jax.lax.broadcasted_iota(jnp.int32, out_ref.shape, 2)
    out_ref[...] = jnp.where((sub == 0) & (lane == 0), tile_sum,
                             jnp.float32(0.0))


def _choose_tile_batch(n, c, itemsize, *, budget_bytes=24 << 20, max_rows=2048):
    """Largest row tile whose *live* VMEM footprint fits the budget.

    Per-element cost: 2*itemsize (double-buffered input DMA) + ~12 B for the
    f32 upcast and ~2 elementwise f32 temporaries (exp(z), select mask).
    Per-row extra: 2 * 128 * 4 B for the lane-padded (TB, 1) label buffers.
    Also capped so the grid has >= 2 tiles whenever N > 8 (v7x megacore).
    """
    if n < 8:
        return n                             # block == full dim (8-div exempt)
    per_row = c * (2 * itemsize + 12) + 2 * 128 * 4
    rows = int(budget_bytes // per_row)
    rows = max(8, min(rows, max_rows))
    rows -= rows % 8
    half_rows = -(-n // 2)                   # cdiv(n, 2)
    half_rows = -(-half_rows // 8) * 8       # round up to a multiple of 8
    rows = min(rows, half_rows)
    return max(8, rows)


def cross_entropy(x, y, *, eta=0.0):
    """Pallas implementation of CrossEntropyLoss.forward.

    x: (N, C) float logits.  y: (N,) integer labels.
    Returns (loss, (msg, loss_value)) mirroring the PyTorch module.
    """
    n, c = x.shape
    itemsize = jnp.dtype(x.dtype).itemsize
    tb = _choose_tile_batch(n, c, itemsize)
    num_tiles = pl.cdiv(n, tb)

    y2 = y.astype(jnp.int32).reshape(n, 1)   # tiny; no copy of the logits

    kernel = functools.partial(_ce_kernel, eta=float(eta), n_total=n)

    partials = pl.pallas_call(
        kernel,
        out_shape=jax.ShapeDtypeStruct((num_tiles, 8, 128), jnp.float32),
        grid_spec=pltpu.PrefetchScalarGridSpec(
            num_scalar_prefetch=0,
            grid=(num_tiles,),
            in_specs=[
                pl.BlockSpec((tb, c), lambda i: (i, 0)),
                pl.BlockSpec((tb, 1), lambda i: (i, 0)),
            ],
            out_specs=pl.BlockSpec((1, 8, 128), lambda i: (i, 0, 0)),
        ),
        compiler_params=pltpu.CompilerParams(
            dimension_semantics=("parallel",),
            vmem_limit_bytes=48 * 1024 * 1024,
        ),
    )(x, y2)

    loss = jnp.sum(partials) / jnp.float32(n)
    return loss, ("01. cross_entropy loss: ", loss)


def _reference(x, y):
    logp = jax.nn.log_softmax(x.astype(jnp.float32), axis=1)
    return -jnp.mean(logp[jnp.arange(x.shape[0]), y])


if __name__ == "__main__":
    key = jax.random.PRNGKey(0)
    kx, ky = jax.random.split(key)

    N, C = 16, 10                      # small synthetic (batch, classes)
    x = jax.random.normal(kx, (N, C), dtype=jnp.float32)
    y = jax.random.randint(ky, (N,), 0, C, dtype=jnp.int32)

    loss, (_msg, _val) = cross_entropy(x, y)
    loss = jax.block_until_ready(loss)
    ref = jax.block_until_ready(_reference(x, y))
    assert jnp.allclose(loss, ref, atol=1e-5, rtol=1e-5), (loss, ref)

    # Also exercise the ragged-last-block path (N not a multiple of 8).
    N2 = 13
    x2 = jax.random.normal(kx, (N2, C), dtype=jnp.float32)
    y2 = jax.random.randint(ky, (N2,), 0, C, dtype=jnp.int32)
    loss2, _ = cross_entropy(x2, y2)
    loss2 = jax.block_until_ready(loss2)
    ref2 = jax.block_until_ready(_reference(x2, y2))
    assert jnp.allclose(loss2, ref2, atol=1e-5, rtol=1e-5), (loss2, ref2)

    print("KERNEL_OK")
</pallas_src>

<mosaic_0001>
module attributes {stable_mosaic.version = 11 : i64} {
  func.func @_ce_kernel(%arg0: i32, %arg1: memref<8x10xf32, #tpu.memory_space<vmem>>, %arg2: memref<8x1xi32, #tpu.memory_space<vmem>>, %arg3: memref<1x8x128xf32, #tpu.memory_space<vmem>>) attributes {dimension_semantics = [#tpu.dimension_semantics<parallel>], iteration_bounds = array<i64: 2>, scalar_prefetch = 0 : i64, scratch_operands = 0 : i64, tpu.core_type = #tpu.core_type<tc>, window_params = [{transform_indices = @transform_0, window_bounds = array<i64: 8, 10>}, {transform_indices = @transform_1, window_bounds = array<i64: 8, 1>}, {transform_indices = @transform_2, window_bounds = array<i64: 1, 8, 128>}]} {
    %c0 = arith.constant 0 : index
    %c0_0 = arith.constant 0 : index
    %0 = vector.load %arg1[%c0, %c0_0] : memref<8x10xf32, #tpu.memory_space<vmem>>, vector<8x10xf32>
    %c0_1 = arith.constant 0 : index
    %c0_2 = arith.constant 0 : index
    %1 = vector.load %arg2[%c0_1, %c0_2] : memref<8x1xi32, #tpu.memory_space<vmem>>, vector<8x1xi32>
    %cst = arith.constant dense<0xFF800000> : vector<8xf32>
    %2 = vector.multi_reduction <maximumf>, %0, %cst [1] : vector<8x10xf32> to vector<8xf32>
    %3 = vector.shape_cast %2 : vector<8xf32> to vector<8x1xf32>
    %4 = vector.broadcast %3 : vector<8x1xf32> to vector<8x10xf32>
    %5 = arith.subf %0, %4 : vector<8x10xf32>
    %6 = math.exp %5 : vector<8x10xf32>
    %cst_3 = arith.constant dense<0.000000e+00> : vector<8xf32>
    %7 = vector.multi_reduction <add>, %6, %cst_3 [1] : vector<8x10xf32> to vector<8xf32>
    %8 = vector.shape_cast %7 : vector<8xf32> to vector<8x1xf32>
    %9 = math.log %8 : vector<8x1xf32>
    %10 = tpu.iota {dimensions = array<i32: 1>} : vector<1x10xi32>
    %11 = vector.broadcast %10 : vector<1x10xi32> to vector<8x10xi32>
    %12 = vector.broadcast %1 : vector<8x1xi32> to vector<8x10xi32>
    %13 = arith.cmpi eq, %11, %12 : vector<8x10xi32>
    %cst_4 = arith.constant 0.000000e+00 : f32
    %14 = vector.broadcast %cst_4 : f32 to vector<8x10xf32>
    %15 = arith.select %13, %5, %14 : vector<8x10xi1>, vector<8x10xf32>
    %cst_5 = arith.constant dense<0.000000e+00> : vector<8xf32>
    %16 = vector.multi_reduction <add>, %15, %cst_5 [1] : vector<8x10xf32> to vector<8xf32>
    %17 = vector.shape_cast %16 : vector<8xf32> to vector<8x1xf32>
    %18 = arith.subf %9, %17 : vector<8x1xf32>
    %c8_i32 = arith.constant 8 : i32
    %19 = arith.muli %arg0, %c8_i32 : i32
    %20 = tpu.iota {dimensions = array<i32: 0>} : vector<8x1xi32>
    %21 = vector.broadcast %19 : i32 to vector<8x1xi32>
    %22 = arith.addi %21, %20 : vector<8x1xi32>
    %c16_i32 = arith.constant 16 : i32
    %23 = vector.broadcast %c16_i32 : i32 to vector<8x1xi32>
    %24 = arith.cmpi slt, %22, %23 : vector<8x1xi32>
    %cst_6 = arith.constant 0.000000e+00 : f32
    %25 = vector.broadcast %cst_6 : f32 to vector<8x1xf32>
    %26 = arith.select %24, %18, %25 : vector<8x1xi1>, vector<8x1xf32>
    %27 = vector.shape_cast %26 : vector<8x1xf32> to vector<1x8x1xf32>
    %cst_7 = arith.constant dense<0.000000e+00> : vector<1xf32>
    %28 = vector.multi_reduction <add>, %27, %cst_7 [1, 2] : vector<1x8x1xf32> to vector<1xf32>
    %29 = vector.shape_cast %28 : vector<1xf32> to vector<1x1x1xf32>
    %30 = vector.extract %29[0, 0, 0] : f32 from vector<1x1x1xf32>
    %31 = tpu.iota {dimensions = array<i32: 1>} : vector<1x8x128xi32>
    %32 = tpu.iota {dimensions = array<i32: 2>} : vector<1x8x128xi32>
    %c0_i32 = arith.constant 0 : i32
    %33 = vector.broadcast %c0_i32 : i32 to vector<1x8x128xi32>
    %34 = arith.cmpi eq, %31, %33 : vector<1x8x128xi32>
    %c0_i32_8 = arith.constant 0 : i32
    %35 = vector.broadcast %c0_i32_8 : i32 to vector<1x8x128xi32>
    %36 = arith.cmpi eq, %32, %35 : vector<1x8x128xi32>
    %37 = arith.andi %34, %36 : vector<1x8x128xi1>
    %cst_9 = arith.constant 0.000000e+00 : f32
    %38 = vector.broadcast %30 : f32 to vector<1x8x128xf32>
    %39 = vector.broadcast %cst_9 : f32 to vector<1x8x128xf32>
    %40 = arith.select %37, %38, %39 : vector<1x8x128xi1>, vector<1x8x128xf32>
    %c0_10 = arith.constant 0 : index
    %c0_11 = arith.constant 0 : index
    %c0_12 = arith.constant 0 : index
    %41 = vector.load %arg3[%c0_10, %c0_11, %c0_12] : memref<1x8x128xf32, #tpu.memory_space<vmem>>, vector<1x8x128xf32>
    tpu.vector_store %arg3[%c0_10, %c0_11, %c0_12], %40 {strides = array<i32>} : memref<1x8x128xf32, #tpu.memory_space<vmem>>, vector<1x8x128xf32>,
    return
  }
  func.func @transform_0(%arg0: i32) -> (i32, i32) {
    %c0_i32 = arith.constant 0 : i32
    %c0_i32_0 = arith.constant 0 : i32
    return %arg0, %c0_i32 : i32, i32
  }
  func.func @transform_1(%arg0: i32) -> (i32, i32) {
    %c0_i32 = arith.constant 0 : i32
    %c0_i32_0 = arith.constant 0 : i32
    return %arg0, %c0_i32 : i32, i32
  }
  func.func @transform_2(%arg0: i32) -> (i32, i32, i32) {
    %c0_i32 = arith.constant 0 : i32
    %c0_i32_0 = arith.constant 0 : i32
    %c0_i32_1 = arith.constant 0 : i32
    return %arg0, %c0_i32, %c0_i32_0 : i32, i32, i32
  }
}

</mosaic_0001>

<llo_original>
// kernel: tpu_custom_call.1
$region0: #{tpu_custom_call.1}
  #allocation0 [shape = 'u32[]', space=smem, size = 0x4, offset = 0x4, fixed_abs, tag = 'smem constant byte address 0x4 - core index']
  #allocation1 [shape = 'u32[72,128]{1,0:T(1,128)}', space=vmem, size = 0x9000, scoped, tag = 'internal scratch']
  %s0 = inlined_call_operand.vmem [shape: f32[16,10], index: 0, kind: input, shape index: {}]
  %s1 = inlined_call_operand.vmem [shape: s32[16,1], index: 1, kind: input, shape index: {}]
  %s2 = inlined_call_operand.hbm [shape: f32[2,8,128], index: 2, kind: output, shape index: {}]
  %s3 = sld [smem:[#allocation0]]
  $region41: #{tpu_custom_call.1} parent=0
    _
  %s5 = ssub.s32 1, %s3
  %s6 = scalar_select 0, %s5, %s3
  $region1: #{tpu_custom_call.1} parent=0
    #allocation2 [shape = 'u8[8192]{0}', space=vmem, size = 0x2000, scoped, tag = 'output window, operand 0']
    #allocation3 [shape = 's32[2]{0}', space=sflag, size = 0x8, scoped, tag = 'scoped memory for tpu_custom_call.1']
    %7 = vsyncpa [#allocation3], 0
    %s8 = scalar_lea.sflag [#allocation3], 1
    %9 = vsyncpa %s8, 0
    loop: start=0, step=1, limit=4
    $region2: #{tpu_custom_call.1} parent=1 // loop_pre_header
      _
    $region3: #{tpu_custom_call.1} parent=1 // loop_header
      %s11 = sphi 0, %s15
      %p12 = scmp.ge.s32.totalorder %s11, 4
      %s21 = sphi 0, %s23
      %s24 = sphi 0, %s21
      %s25 = sphi 0, %s24
      %s41 = sphi 0, %s25
      %s47 = sphi 0, %s49
      %s50 = sphi 0, %s47
      %s51 = sphi 0, %s50
      %s67 = sphi 0, %s51
      %s73 = sphi 0, %s75
      %s76 = sphi 0, %s73
      %s77 = sphi 0, %s76
      %s93 = sphi 0, %s77
    $region4: #{tpu_custom_call.1} parent=1 // loop_header_branch
      %14 = sbr.rel (%p12) target = $region8
    $region5: #{tpu_custom_call.1} parent=1 // loop_body
      %s16 = ssub.s32 %s11, 1
      %s17 = ssub.s32 %s11, 2
      %s18 = sadd.s32 %s11, 1
      %s19 = ssub.s32 %s11, %s18
      %p20 = scmp.eq.s32.totalorder %s19, 0
      %s22 = sadd.s32 %s21, 1
      %s23 = scalar_select %p20, %s21, %s22
      %p26 = pneg %p20
      %p27 = scmp.eq.s32.totalorder %s11, 1
      %p28 = por %p26, %p27
      %p29 = scmp.ne.s32.totalorder %s21, %s24
      %p30 = scmp.eq.s32.totalorder %s11, 0
      %p31 = por %p29, %p30
      %p32 = scmp.ne.s32.totalorder %s21, %s24
      %p33 = scmp.eq.s32.totalorder %s16, 1
      %p34 = por %p32, %p33
      %p35 = scmp.ne.s32.totalorder %s24, %s25
      %p36 = scmp.eq.s32.totalorder %s16, 0
      %p37 = por %p35, %p36
      %p38 = scmp.ne.s32.totalorder %s24, %s25
      %p39 = scmp.eq.s32.totalorder %s17, 1
      %p40 = por %p38, %p39
      %p42 = scmp.ne.s32.totalorder %s25, %s41
      %p43 = scmp.eq.s32.totalorder %s17, 0
      %p44 = por %p42, %p43
      %s45 = ssub.s32 %s11, %s18
      %p46 = scmp.eq.s32.totalorder %s45, 0
      %s48 = sadd.s32 %s47, 1
      %s49 = scalar_select %p46, %s47, %s48
      %p52 = pneg %p46
      %p53 = scmp.eq.s32.totalorder %s11, 1
      %p54 = por %p52, %p53
      %p55 = scmp.ne.s32.totalorder %s47, %s50
      %p56 = scmp.eq.s32.totalorder %s11, 0
      %p57 = por %p55, %p56
      %p58 = scmp.ne.s32.totalorder %s47, %s50
      %p59 = scmp.eq.s32.totalorder %s16, 1
      %p60 = por %p58, %p59
      %p61 = scmp.ne.s32.totalorder %s50, %s51
      %p62 = scmp.eq.s32.totalorder %s16, 0
      %p63 = por %p61, %p62
      %p64 = scmp.ne.s32.totalorder %s50, %s51
      %p65 = scmp.eq.s32.totalorder %s17, 1
      %p66 = por %p64, %p65
      %p68 = scmp.ne.s32.totalorder %s51, %s67
      %p69 = scmp.eq.s32.totalorder %s17, 0
      %p70 = por %p68, %p69
      %s71 = ssub.s32 %s11, %s18
      %p72 = scmp.eq.s32.totalorder %s71, 0
      %s74 = sadd.s32 %s73, 1
      %s75 = scalar_select %p72, %s73, %s74
      %p78 = pneg %p72
      %p79 = scmp.eq.s32.totalorder %s11, 1
      %p80 = por %p78, %p79
      %p81 = scmp.ne.s32.totalorder %s73, %s76
      %p82 = scmp.eq.s32.totalorder %s11, 0
      %p83 = por %p81, %p82
      %p84 = scmp.ne.s32.totalorder %s73, %s76
      %p85 = scmp.eq.s32.totalorder %s16, 1
      %p86 = por %p84, %p85
      %p87 = scmp.ne.s32.totalorder %s76, %s77
      %p88 = scmp.eq.s32.totalorder %s16, 0
      %p89 = por %p87, %p88
      %p90 = scmp.ne.s32.totalorder %s76, %s77
      %p91 = scmp.eq.s32.totalorder %s17, 1
      %p92 = por %p90, %p91
      %p94 = scmp.ne.s32.totalorder %s77, %s93
      %p95 = scmp.eq.s32.totalorder %s17, 0
      %p96 = por %p94, %p95
      %p97 = scmp.le.s32.totalorder 1, %s11
      %p98 = scmp.lt.s32.totalorder %s11, 3
      %p99 = pnand %p97, %p98
      %p100 = pneg %p99
      // Predicated region
      $region9: #{tpu_custom_call.1} parent=5 // pred_check
        _
      $region10: #{tpu_custom_call.1} parent=5 // pred_check_branch
        %102 = sbr.rel (%p99) target = $region12
      $region11: #{tpu_custom_call.1} parent=5 // pred_region
        %s103 = ssub.s32 %s11, 1
      $region12: #{tpu_custom_call.1} parent=5 // pred_fallthru
        _
      %p104 = scmp.lt.s32.totalorder %s11, 2
      // Predicated region
      $region13: #{tpu_custom_call.1} parent=5 // pred_check
        %p105 = pneg %p104
      $region14: #{tpu_custom_call.1} parent=5 // pred_check_branch
        %107 = sbr.rel (%p105) target = $region16
      $region15: #{tpu_custom_call.1} parent=5 // pred_region
        // Predicated region
        $region17: #{tpu_custom_call.1} parent=15 // pred_check
          %p108 = pneg %p31
        $region18: #{tpu_custom_call.1} parent=15 // pred_check_branch
          %110 = sbr.rel (%p108) target = $region20
        $region19: #{tpu_custom_call.1} parent=15 // pred_region
          %p111 = scmp.lt.s32.totalorder %s11, 1
          %s112 = scalar_select %p111, %s11, 1
          %s113 = smul.addr %s112, 8
          %s114 = scalar_lea.vmem %s0, %s113
        $region20: #{tpu_custom_call.1} parent=15 // pred_fallthru
          _
        // Predicated region
        $region21: #{tpu_custom_call.1} parent=15 // pred_check
          %p115 = pneg %p57
        $region22: #{tpu_custom_call.1} parent=15 // pred_check_branch
          %117 = sbr.rel (%p115) target = $region24
        $region23: #{tpu_custom_call.1} parent=15 // pred_region
          %p118 = scmp.lt.s32.totalorder %s11, 1
          %s119 = scalar_select %p118, %s11, 1
          %s120 = smul.addr %s119, 8
          %s121 = scalar_lea.vmem %s1, %s120
        $region24: #{tpu_custom_call.1} parent=15 // pred_fallthru
          _
      $region16: #{tpu_custom_call.1} parent=5 // pred_fallthru
        _
      %p122 = scmp.le.s32.totalorder 1, %s11
      %p123 = scmp.lt.s32.totalorder %s11, 3
      %p124 = pnand %p122, %p123
      %p125 = pneg %p124
      // Predicated region
      $region25: #{tpu_custom_call.1} parent=5 // pred_check
        _
      $region26: #{tpu_custom_call.1} parent=5 // pred_check_branch
        %127 = sbr.rel (%p124) target = $region28
      $region27: #{tpu_custom_call.1} parent=5 // pred_region
        %s128 = ssub.s32 %s11, 1
        %p129 = scmp.lt.s32.totalorder %s16, 1
        %s130 = scalar_select %p129, %s16, 1
        %s131 = smul.addr %s130, 8
        %s132 = scalar_lea.vmem %s0, %s131
        %p133 = pneg %p37
        %p134 = pneg %p34
        %p135 = scmp.lt.s32.totalorder %s16, 1
        %s136 = scalar_select %p135, %s16, 1
        %s137 = smul.addr %s136, 8
        %s138 = scalar_lea.vmem %s1, %s137
        %p139 = pneg %p63
        %p140 = pneg %p60
        %p141 = pneg %p89
        %p142 = pneg %p86
        %s143 = sand.u32 %s76, 1
        %s144 = scalar_lea.sflag [#allocation3], %s143
        %s145 = sand.u32 %s76, 1
        %s146 = smul.addr %s145, 8
        %s147 = scalar_lea.vmem [#allocation2], %s146
        %p148 = scmp.lt.s32.totalorder %s16, 1
        %s149 = scalar_select %p148, %s16, 1
        %s150 = smul.addr %s149, 8
        %s151 = scalar_lea.vmem %s0, %s150
        %p152 = scmp.lt.s32.totalorder %s16, 1
        %s153 = scalar_select %p152, %s16, 1
        %s154 = smul.addr %s153, 8
        %s155 = scalar_lea.vmem %s1, %s154
        %v156 = vld [vmem:[%s151] sm:$0xff]
        %v157 = vld [vmem:[%s155] sm:$0xff]
        %vm158 = vcmask 80896
        %v159 = vsel %vm158, %v156, -inf
        %160 = vmax.xlane.f32.xlu0 %v159
        %v161 = vpop.xlane.xlu0 %160
        %v162 = vsub.f32 %v156, %v161
        %v163 = vmul.f32 %v162, 1.442695
        %v164 = vpow.pop %v163
        %v165 = vsel %vm158, %v164, 0.0
        %166 = vadd.xlane.f32.xlu0 %v165
        %v167 = vpop.xlane.xlu0 %166
        %v168 = vlog2.pop %v167
        %v169 = vmul.f32 %v168, 0.6931472
        %v170 = vlaneseq
        %v171 = vand.u32 %v170, 127
        %172 = vset.pattern.permute.xlu0 0
        %173 = vperm.xlu0 %172, %v157
        %v174 = vpop.permute.xlu0 %173
        %vm175 = vcmp.eq.s32.totalorder %v171, %v174
        %v176 = vsel %vm175, %v162, 0.0
        %v177 = vsel %vm158, %v176, 0.0
        %178 = vadd.xlane.f32.xlu0 %v177
        %v179 = vpop.xlane.xlu0 %178
        %v180 = vsub.f32 %v169, %v179
        %s181 = smul.u32 %s16, 8
        %v182 = vlaneseq
        %v183 = vshrl.u32 %v182, 7
        %v184 = vstv %s181
        %v185 = vadd.s32 %v184, %v183
        %vm186 = vcmp.lt.s32.totalorder %v185, 16
        %v187 = vsel %vm186, %v180, 0.0
        %vm188 = vcmask 7168
        %v189 = vsel %vm188, %v187, 0.0
        %190 = vadd.xlane.f32.xlu0 %v189
        %v191 = vpop.xlane.xlu0 %190
        %v192 = vrot.slane %v191, 4
        %v193 = vadd.f32 %v191, %v192
        %v194 = vrot.slane %v193, 2
        %v195 = vadd.f32 %v193, %v194
        %v196 = vrot.slane %v195, 1
        %v197 = vadd.f32 %v195, %v196
        %s198 = vtos %v197
        %vm199 = vcmp.eq.s32.totalorder %v183, 0
        %vm200 = vcmp.eq.s32.totalorder %v171, 0
        %vm201 = vmand %vm199, %vm200
        %v202 = vstv %s198
        %v203 = vsel %vm201, %v202, 0.0
        %204 = vst [vmem:[%s147] sm:$0xff] %v203
        %s205 = sand.u32 %s76, 1
        %s206 = scalar_lea.sflag [#allocation3], %s205
        %s207 = sand.u32 %s76, 1
        %s208 = smul.addr %s207, 8
        %s209 = scalar_lea.vmem [#allocation2], %s208
        // Predicated region
        $region29: #{tpu_custom_call.1} parent=27 // pred_check
          %p210 = pneg %p86
        $region30: #{tpu_custom_call.1} parent=27 // pred_check_branch
          %212 = sbr.rel (%p210) target = $region32
        $region31: #{tpu_custom_call.1} parent=27 // pred_region
          %214 = vsyncadd %s206, 0
          %s215 = smul.addr %s16, 8
          %s216 = scalar_lea.hbm %s2, %s215
          %s218 = sshll.u32 %s209, 4
          %s219 = int_to_ptr.vmem [resolvable:$true] %s218
          %s220 = sshll.u32 %s216, 4
          %s221 = int_to_ptr.hbm [resolvable:$true] %s220
          %223 = dma.vmem_to_hbm [thread:$0]  %s219, 128, %s221, %s206
        $region32: #{tpu_custom_call.1} parent=27 // pred_fallthru
          _
      $region28: #{tpu_custom_call.1} parent=5 // pred_fallthru
        _
      %p224 = scmp.le.s32.totalorder 2, %s11
      // Predicated region
      $region33: #{tpu_custom_call.1} parent=5 // pred_check
        %p225 = pneg %p224
      $region34: #{tpu_custom_call.1} parent=5 // pred_check_branch
        %227 = sbr.rel (%p225) target = $region36
      $region35: #{tpu_custom_call.1} parent=5 // pred_region
        %s228 = ssub.s32 %s11, 2
        // Predicated region
        $region37: #{tpu_custom_call.1} parent=35 // pred_check
          %p229 = pneg %p92
        $region38: #{tpu_custom_call.1} parent=35 // pred_check_branch
          %231 = sbr.rel (%p229) target = $region40
        $region39: #{tpu_custom_call.1} parent=35 // pred_region
          %s232 = sand.u32 %s77, 1
          %s233 = scalar_lea.sflag [#allocation3], %s232
          %s234 = sand.u32 %s77, 1
          %s235 = smul.addr %s234, 8
          %s236 = scalar_lea.vmem [#allocation2], %s235
          %238 = dma.done %s233, 128
        $region40: #{tpu_custom_call.1} parent=35 // pred_fallthru
          _
      $region36: #{tpu_custom_call.1} parent=5 // pred_fallthru
        _
    $region6: #{tpu_custom_call.1} parent=1 // loop_footer
      %s15 = sadd.s32 1, %s11
    $region7: #{tpu_custom_call.1} parent=1 // loop_footer_branch
      %10 = sbr.rel target = $region3
    $region8: #{tpu_custom_call.1} parent=1 // loop_exit
      _
    %239 = vsyncpa [#allocation3], 1
    %s240 = scalar_lea.sflag [#allocation3], 1
    %241 = vsyncpa %s240, 1

</llo_original>
